<compile_context>
chip_gen: v7x
topology: tpu7x:2x2x1
jax: 0.10.0
libtpu: 0.0.40
codegen_flags: <defaults>
</compile_context>

<pallas_src>
import functools

import jax
import jax.numpy as jnp
from jax.experimental import pallas as pl
from jax.experimental.pallas import tpu as pltpu


# --------------------------------------------------------------------------------------
# Tiling helpers
# --------------------------------------------------------------------------------------

def _vmem_budget_bytes():
    """Total double-buffered working-set budget, generation aware.

    v5e/v6e have 128 MiB physical VMEM, v7x only 64 MiB per TensorCore: cap the
    footprint at 48 MiB and never above 60% of whatever the hardware reports."""
    phys = 128 * 1024 * 1024
    try:
        info = pltpu.get_tpu_info()
        phys = int(getattr(info, "vmem_capacity_bytes", phys))
    except Exception:
        pass
    return int(min(48 * 1024 * 1024, (phys * 3) // 5))


def _pick_block_rows(n_rows, lane_width, dtype, block_rows=None):
    """Row-tile size: large enough to amortize the ~0.35us per-grid-step overhead,
    a multiple of the sublane-packing granularity (8 f32 / 16 bf16 / 32 int8 rows),
    budgeted for native block (x2 double buffer) + its f32 upcast, and capped so the
    grid keeps >= 2 tiles whenever possible (both v7x TensorCores stay fed)."""
    itemsize = jnp.dtype(dtype).itemsize
    gran = max(8, 32 // itemsize)
    if block_rows is not None:
        tr = max(gran, (int(block_rows) // gran) * gran)
    else:
        budget = _vmem_budget_bytes()
        lanes = ((lane_width + 127) // 128) * 128
        row_bytes = lanes * (2 * itemsize + 4) + 512      # 2x native stream + f32 live copy
        tr = max(gran, ((budget // (2 * row_bytes)) // gran) * gran)
        if n_rows > gran:                                  # keep >= 2 grid tiles
            half = (((n_rows + 1) // 2 + gran - 1) // gran) * gran
            tr = min(tr, max(gran, half))
    if tr >= n_rows:
        return int(n_rows)                                 # single full-extent block
    return int(tr)


# --------------------------------------------------------------------------------------
# Packed kernel (C <= 64): k = 128 // Cp samples per 128-lane row
# --------------------------------------------------------------------------------------

def _packed_kernel(tl_ref, x_ref, cw_ref, e_ref, out_ref, *, cp, gamma, n_rows, block_rows):
    """One grid step over packed rows.

    tl_ref:  (TB, k)     int32   target lane per sample (-1 marks a padded sample)
    x_ref:   (TB, 128)   logits, native dtype (k samples of Cp classes per row)
    cw_ref:  (1, 128)    f32     class weight per lane (class = lane % Cp), resident
    e_ref:   (k, 128)    f32     expansion matrix E[j, l] = (l // Cp == j), resident
    out_ref: (1, 8, 128) f32     per-tile partial sum (broadcast scalar)
    """
    i = pl.program_id(0)
    x = x_ref[...].astype(jnp.float32)                 # upcast AFTER the DMA
    lane = jax.lax.broadcasted_iota(jnp.int32, x.shape, 1)

    # Segmented max over each aligned Cp-lane group (XOR butterfly on the XLU):
    # every lane ends up holding its own sample's max.
    m = x
    d = 1
    while d < cp:
        hi = pltpu.roll(m, shift=128 - d, axis=1)      # lane i <- lane i + d
        lo = pltpu.roll(m, shift=d, axis=1)            # lane i <- lane i - d
        m = jnp.maximum(m, jnp.where((lane & d) == 0, hi, lo))
        d *= 2

    z = x - m
    ez = jnp.exp(z)

    # Segmented sum (same butterfly) -> per-lane softmax denominator.
    s = ez
    d = 1
    while d < cp:
        hi = pltpu.roll(s, shift=128 - d, axis=1)
        lo = pltpu.roll(s, shift=d, axis=1)
        s = s + jnp.where((lane & d) == 0, hi, lo)
        d *= 2
    lse = jnp.log(s)

    # Spread each sample's target-lane index across its Cp lanes with one MXU matmul
    # (exact: small integers x one-hot columns); the MXU is otherwise idle here.
    t_lane = jnp.dot(tl_ref[...].astype(jnp.float32), e_ref[...],
                     preferred_element_type=jnp.float32)
    onehot = t_lane == lane.astype(jnp.float32)

    # ce is nonzero only at each sample's target lane, and focal(0) == 0, so the focal
    # modulation can be applied lane-wise and everything summed in one go.
    ce = jnp.where(onehot, cw_ref[...] * (lse - z), 0.0)
    pt = jnp.exp(-ce)
    omp = 1.0 - pt
    g = float(gamma)
    if g == int(g) and g >= 0:
        mod = jax.lax.integer_pow(omp, int(g))         # VPU, not EUP pow
    else:
        mod = jnp.maximum(omp, 0.0) ** jnp.float32(g)  # clamp: pt can round above 1
    focal = mod * ce

    # Mask rows past the real packed-row count (last tile may see stale VMEM);
    # a select so NaNs from garbage rows cannot reach the sum.
    row = i * block_rows + jax.lax.broadcasted_iota(jnp.int32, focal.shape, 0)
    focal = jnp.where(row < n_rows, focal, 0.0)

    out_ref[...] = jnp.broadcast_to(jnp.sum(focal), out_ref.shape)


def _focal_loss_packed(inputs, targets_i32, class_weights, alpha, gamma, block_rows):
    n, c = inputs.shape
    cp = 1 if c <= 1 else 1 << (c - 1).bit_length()    # next power of two >= C
    k = 128 // cp
    n_pad = ((n + k - 1) // k) * k
    n_rows = n_pad // k

    x = inputs
    if n_pad != n or cp != c:
        # Pad classes / samples with a very negative logit (softmax-neutral; padded
        # samples are neutralized via target lane -1 below).
        x = jnp.pad(x, ((0, n_pad - n), (0, cp - c)), constant_values=-1e30)
    x_packed = x.reshape(n_rows, 128)                   # contiguous; free when no padding

    sample = jnp.arange(n_pad, dtype=jnp.int32)
    t_pad = jnp.pad(targets_i32, (0, n_pad - n))
    t_lane = jnp.where(sample < n, (sample % k) * cp + t_pad, -1)
    t_lane = t_lane.reshape(n_rows, k).astype(jnp.int32)

    cw_lane = jnp.tile(jnp.pad(class_weights, (0, cp - c)), k)
    cw_lane = cw_lane.reshape(1, 128).astype(jnp.float32)

    owner = jnp.arange(128, dtype=jnp.int32) // cp
    expand = (owner[None, :] == jnp.arange(k, dtype=jnp.int32)[:, None]).astype(jnp.float32)

    tb = _pick_block_rows(n_rows, 128, inputs.dtype, block_rows)
    num_tiles = pl.cdiv(n_rows, tb)

    kernel = functools.partial(_packed_kernel, cp=cp, gamma=float(gamma),
                               n_rows=n_rows, block_rows=tb)
    itemsize = jnp.dtype(inputs.dtype).itemsize
    cost = pl.CostEstimate(
        flops=int(20 * n_rows * 128),
        transcendentals=int(3 * n_rows * 128),
        bytes_accessed=int(n_rows * 128 * itemsize + n_rows * k * 4
                           + num_tiles * 8 * 128 * 4),
    )

    partials = pl.pallas_call(
        kernel,
        out_shape=jax.ShapeDtypeStruct((num_tiles, 8, 128), jnp.float32),
        grid=(num_tiles,),
        in_specs=[
            pl.BlockSpec((tb, k), lambda i: (i, 0)),        # target lanes
            pl.BlockSpec((tb, 128), lambda i: (i, 0)),      # packed logits (native dtype)
            pl.BlockSpec((1, 128), lambda i: (0, 0)),       # per-lane class weights (resident)
            pl.BlockSpec((k, 128), lambda i: (0, 0)),       # expansion matrix (resident)
        ],
        out_specs=pl.BlockSpec((1, 8, 128), lambda i: (i, 0, 0)),
        compiler_params=pltpu.CompilerParams(
            dimension_semantics=("parallel",),
            vmem_limit_bytes=_vmem_budget_bytes(),
        ),
        cost_estimate=cost,
    )(t_lane, x_packed, cw_lane, expand)

    # mean reduction; alpha folded into the final scalar scale (free).
    return jnp.sum(partials) * (jnp.float32(alpha) / (jnp.float32(n) * 1024.0))


# --------------------------------------------------------------------------------------
# Wide kernel (C > 64): one sample per row
# --------------------------------------------------------------------------------------

def _wide_kernel(t_ref, x_ref, w_ref, out_ref, *, gamma, n_total, block_n):
    """t_ref (TB,1) int32, x_ref (TB,C) native dtype, w_ref (1,C) f32 -> (1,8,128) partial."""
    i = pl.program_id(0)
    x = x_ref[...].astype(jnp.float32)
    t = t_ref[...]
    cw = w_ref[...]
    tn, c = x.shape

    class_ids = jax.lax.broadcasted_iota(jnp.int32, (tn, c), 1)
    onehot = class_ids == t

    m = jnp.max(x, axis=1, keepdims=True)
    z = x - m
    lse = jnp.log(jnp.sum(jnp.exp(z), axis=1, keepdims=True))

    # Fused weighted NLL: one masked cross-lane reduce (select blocks inf/NaN).
    ce = jnp.sum(jnp.where(onehot, cw * (lse - z), 0.0), axis=1, keepdims=True)

    pt = jnp.exp(-ce)
    omp = 1.0 - pt
    g = float(gamma)
    if g == int(g) and g >= 0:
        mod = jax.lax.integer_pow(omp, int(g))
    else:
        mod = jnp.maximum(omp, 0.0) ** jnp.float32(g)
    focal = mod * ce

    row = i * block_n + jax.lax.broadcasted_iota(jnp.int32, (tn, 1), 0)
    focal = jnp.where(row < n_total, focal, 0.0)

    out_ref[...] = jnp.broadcast_to(jnp.sum(focal), out_ref.shape)


def _focal_loss_wide(inputs, targets_i32, class_weights, alpha, gamma, block_rows):
    n, c = inputs.shape
    t2d = targets_i32.reshape(n, 1)
    w2d = class_weights.reshape(1, c).astype(jnp.float32)

    tb = _pick_block_rows(n, c, inputs.dtype, block_rows)
    num_tiles = pl.cdiv(n, tb)

    kernel = functools.partial(_wide_kernel, gamma=float(gamma), n_total=n, block_n=tb)
    itemsize = jnp.dtype(inputs.dtype).itemsize
    cost = pl.CostEstimate(
        flops=int(10 * n * c),
        transcendentals=int(n * c + 2 * n),
        bytes_accessed=int(n * c * itemsize + n * 4 + c * 4 + num_tiles * 8 * 128 * 4),
    )

    partials = pl.pallas_call(
        kernel,
        out_shape=jax.ShapeDtypeStruct((num_tiles, 8, 128), jnp.float32),
        grid=(num_tiles,),
        in_specs=[
            pl.BlockSpec((tb, 1), lambda i: (i, 0)),        # targets
            pl.BlockSpec((tb, c), lambda i: (i, 0)),        # logits (native dtype)
            pl.BlockSpec((1, c), lambda i: (0, 0)),         # class weights (resident)
        ],
        out_specs=pl.BlockSpec((1, 8, 128), lambda i: (i, 0, 0)),
        compiler_params=pltpu.CompilerParams(
            dimension_semantics=("parallel",),
            vmem_limit_bytes=_vmem_budget_bytes(),
        ),
        cost_estimate=cost,
    )(t2d, inputs, w2d)

    return jnp.sum(partials) * (jnp.float32(alpha) / (jnp.float32(n) * 1024.0))


# --------------------------------------------------------------------------------------
# Public entry point
# --------------------------------------------------------------------------------------

def weighted_focal_loss(inputs, targets, alpha=1.0, gamma=2.0, block_rows=None):
    """inputs: (N, C) logits (any float dtype); targets: (N,) integer class indices."""
    n, c = inputs.shape
    t32 = targets.astype(jnp.int32)

    # Global class weights via bincount (outside the kernel). Absent classes get
    # weight 0 instead of PyTorch's inf; they are never selected by any target, so the
    # result only differs from PyTorch when PyTorch itself would return inf/NaN.
    counts = jnp.bincount(t32, length=c).astype(jnp.float32)
    class_weights = jnp.where(counts > 0,
                              jnp.float32(n) / (jnp.float32(c) * counts), 0.0)

    if c <= 64:
        return _focal_loss_packed(inputs, t32, class_weights, alpha, gamma, block_rows)
    return _focal_loss_wide(inputs, t32, class_weights, alpha, gamma, block_rows)


# --------------------------------------------------------------------------------------
# Pure-JAX reference (mirrors the PyTorch forward) + tests
# --------------------------------------------------------------------------------------

def _reference(inputs, targets, alpha=1.0, gamma=2.0):
    n, c = inputs.shape
    counts = jnp.bincount(targets, length=c).astype(jnp.float32)
    cw = jnp.where(counts > 0, counts.sum() / (c * counts), 0.0)
    logp = jax.nn.log_softmax(inputs.astype(jnp.float32), axis=-1)
    nll = -jnp.take_along_axis(logp, targets[:, None], axis=1)[:, 0]
    ce = cw[targets] * nll
    pt = jnp.exp(-ce)
    return (alpha * (1.0 - pt) ** gamma * ce).mean()


if __name__ == "__main__":
    key = jax.random.PRNGKey(0)
    ks = jax.random.split(key, 8)

    def check(name, x, t, **kw):
        got = jax.block_until_ready(weighted_focal_loss(x, t, **kw))
        want = _reference(x, t, alpha=kw.get("alpha", 1.0), gamma=kw.get("gamma", 2.0))
        assert jnp.allclose(got, want, rtol=1e-5, atol=1e-5), (name, got, want)

    # 1) packed path, zero-copy layout: N=64, C=4 -> 32 samples per 128-lane row.
    x1 = jax.random.normal(ks[0], (64, 4), dtype=jnp.float32)
    t1 = jax.random.randint(ks[1], (64,), 0, 4, dtype=jnp.int32)
    check("packed", x1, t1)

    # 2) packed path with class padding (C=3 -> 4) and sample padding (N=50 -> 64).
    x2 = jax.random.normal(ks[2], (50, 3), dtype=jnp.float32)
    t2 = jax.random.randint(ks[3], (50,), 0, 3, dtype=jnp.int32)
    check("packed_pad", x2, t2)

    # 3) packed path, multi-tile parallel grid + last-tile row masking
    #    (600 samples -> 19 packed rows, forced 8-row tiles -> 3 grid steps).
    x3 = jax.random.normal(ks[4], (600, 4), dtype=jnp.float32)
    t3 = jax.random.randint(ks[5], (600,), 0, 4, dtype=jnp.int32)
    check("packed_grid", x3, t3, block_rows=8)

    # 4) wide path (C > 64): batch grid + fused masked reduce.
    x4 = jax.random.normal(ks[6], (48, 256), dtype=jnp.float32)
    t4 = jax.random.randint(ks[7], (48,), 0, 256, dtype=jnp.int32)
    check("wide", x4, t4, block_rows=16)

    print("KERNEL_OK")
</pallas_src>

<mosaic_0001>
module attributes {stable_mosaic.version = 11 : i64} {
  func.func @_packed_kernel(%arg0: i32, %arg1: memref<2x32xi32, #tpu.memory_space<vmem>>, %arg2: memref<2x128xf32, #tpu.memory_space<vmem>>, %arg3: memref<1x128xf32, #tpu.memory_space<vmem>>, %arg4: memref<32x128xf32, #tpu.memory_space<vmem>>, %arg5: memref<1x8x128xf32, #tpu.memory_space<vmem>>) attributes {dimension_semantics = [#tpu.dimension_semantics<parallel>], iteration_bounds = array<i64: 1>, scalar_prefetch = 0 : i64, scratch_operands = 0 : i64, tpu.core_type = #tpu.core_type<tc>, window_params = [{transform_indices = @transform_0, window_bounds = array<i64: 2, 32>}, {transform_indices = @transform_1, window_bounds = array<i64: 2, 128>}, {pipeline_mode = #tpu.pipeline_mode<synchronous>, transform_indices = @transform_2, window_bounds = array<i64: 1, 128>}, {pipeline_mode = #tpu.pipeline_mode<synchronous>, transform_indices = @transform_3, window_bounds = array<i64: 32, 128>}, {transform_indices = @transform_4, window_bounds = array<i64: 1, 8, 128>}]} {
    %c0 = arith.constant 0 : index
    %c0_0 = arith.constant 0 : index
    %0 = vector.load %arg2[%c0, %c0_0] : memref<2x128xf32, #tpu.memory_space<vmem>>, vector<2x128xf32>
    %1 = tpu.iota {dimensions = array<i32: 1>} : vector<2x128xi32>
    %c127_i32 = arith.constant 127 : i32
    %2 = tpu.dynamic_rotate %0 by %c127_i32 dim 1 : vector<2x128xf32>, i32 -> vector<2x128xf32>
    %c1_i32 = arith.constant 1 : i32
    %3 = tpu.dynamic_rotate %0 by %c1_i32 dim 1 : vector<2x128xf32>, i32 -> vector<2x128xf32>
    %c1_i32_1 = arith.constant 1 : i32
    %4 = vector.broadcast %c1_i32_1 : i32 to vector<2x128xi32>
    %5 = arith.andi %1, %4 : vector<2x128xi32>
    %c0_i32 = arith.constant 0 : i32
    %6 = vector.broadcast %c0_i32 : i32 to vector<2x128xi32>
    %7 = arith.cmpi eq, %5, %6 : vector<2x128xi32>
    %8 = arith.select %7, %2, %3 : vector<2x128xi1>, vector<2x128xf32>
    %9 = arith.maximumf %0, %8 : vector<2x128xf32>
    %c126_i32 = arith.constant 126 : i32
    %10 = tpu.dynamic_rotate %9 by %c126_i32 dim 1 : vector<2x128xf32>, i32 -> vector<2x128xf32>
    %c2_i32 = arith.constant 2 : i32
    %11 = tpu.dynamic_rotate %9 by %c2_i32 dim 1 : vector<2x128xf32>, i32 -> vector<2x128xf32>
    %c2_i32_2 = arith.constant 2 : i32
    %12 = vector.broadcast %c2_i32_2 : i32 to vector<2x128xi32>
    %13 = arith.andi %1, %12 : vector<2x128xi32>
    %c0_i32_3 = arith.constant 0 : i32
    %14 = vector.broadcast %c0_i32_3 : i32 to vector<2x128xi32>
    %15 = arith.cmpi eq, %13, %14 : vector<2x128xi32>
    %16 = arith.select %15, %10, %11 : vector<2x128xi1>, vector<2x128xf32>
    %17 = arith.maximumf %9, %16 : vector<2x128xf32>
    %18 = arith.subf %0, %17 : vector<2x128xf32>
    %19 = math.exp %18 : vector<2x128xf32>
    %c127_i32_4 = arith.constant 127 : i32
    %20 = tpu.dynamic_rotate %19 by %c127_i32_4 dim 1 : vector<2x128xf32>, i32 -> vector<2x128xf32>
    %c1_i32_5 = arith.constant 1 : i32
    %21 = tpu.dynamic_rotate %19 by %c1_i32_5 dim 1 : vector<2x128xf32>, i32 -> vector<2x128xf32>
    %c1_i32_6 = arith.constant 1 : i32
    %22 = vector.broadcast %c1_i32_6 : i32 to vector<2x128xi32>
    %23 = arith.andi %1, %22 : vector<2x128xi32>
    %c0_i32_7 = arith.constant 0 : i32
    %24 = vector.broadcast %c0_i32_7 : i32 to vector<2x128xi32>
    %25 = arith.cmpi eq, %23, %24 : vector<2x128xi32>
    %26 = arith.select %25, %20, %21 : vector<2x128xi1>, vector<2x128xf32>
    %27 = arith.addf %19, %26 : vector<2x128xf32>
    %c126_i32_8 = arith.constant 126 : i32
    %28 = tpu.dynamic_rotate %27 by %c126_i32_8 dim 1 : vector<2x128xf32>, i32 -> vector<2x128xf32>
    %c2_i32_9 = arith.constant 2 : i32
    %29 = tpu.dynamic_rotate %27 by %c2_i32_9 dim 1 : vector<2x128xf32>, i32 -> vector<2x128xf32>
    %c2_i32_10 = arith.constant 2 : i32
    %30 = vector.broadcast %c2_i32_10 : i32 to vector<2x128xi32>
    %31 = arith.andi %1, %30 : vector<2x128xi32>
    %c0_i32_11 = arith.constant 0 : i32
    %32 = vector.broadcast %c0_i32_11 : i32 to vector<2x128xi32>
    %33 = arith.cmpi eq, %31, %32 : vector<2x128xi32>
    %34 = arith.select %33, %28, %29 : vector<2x128xi1>, vector<2x128xf32>
    %35 = arith.addf %27, %34 : vector<2x128xf32>
    %36 = math.log %35 : vector<2x128xf32>
    %c0_12 = arith.constant 0 : index
    %c0_13 = arith.constant 0 : index
    %37 = vector.load %arg1[%c0_12, %c0_13] : memref<2x32xi32, #tpu.memory_space<vmem>>, vector<2x32xi32>
    %38 = arith.sitofp %37 : vector<2x32xi32> to vector<2x32xf32>
    %c0_14 = arith.constant 0 : index
    %c0_15 = arith.constant 0 : index
    %39 = vector.load %arg4[%c0_14, %c0_15] : memref<32x128xf32, #tpu.memory_space<vmem>>, vector<32x128xf32>
    %cst = arith.constant dense<0.000000e+00> : vector<2x128xf32>
    %40 = tpu.matmul %38, %39, %cst {dimension_numbers = #tpu.dot_dimension_numbers<[1], [0], [0], [1], [0, 0, 1, 1], [], []>} : vector<2x32xf32>, vector<32x128xf32>, vector<2x128xf32> -> vector<2x128xf32>
    %41 = arith.sitofp %1 : vector<2x128xi32> to vector<2x128xf32>
    %42 = arith.cmpf oeq, %40, %41 : vector<2x128xf32>
    %c0_16 = arith.constant 0 : index
    %c0_17 = arith.constant 0 : index
    %43 = vector.load %arg3[%c0_16, %c0_17] : memref<1x128xf32, #tpu.memory_space<vmem>>, vector<1x128xf32>
    %44 = arith.subf %36, %18 : vector<2x128xf32>
    %45 = vector.broadcast %43 : vector<1x128xf32> to vector<2x128xf32>
    %46 = arith.mulf %45, %44 : vector<2x128xf32>
    %cst_18 = arith.constant 0.000000e+00 : f32
    %47 = vector.broadcast %cst_18 : f32 to vector<2x128xf32>
    %48 = arith.select %42, %46, %47 : vector<2x128xi1>, vector<2x128xf32>
    %cst_19 = arith.constant 0.000000e+00 : f32
    %49 = vector.broadcast %cst_19 : f32 to vector<2x128xf32>
    %50 = arith.subf %49, %48 : vector<2x128xf32>
    %51 = math.exp %50 : vector<2x128xf32>
    %cst_20 = arith.constant 1.000000e+00 : f32
    %52 = vector.broadcast %cst_20 : f32 to vector<2x128xf32>
    %53 = arith.subf %52, %51 : vector<2x128xf32>
    %54 = arith.mulf %53, %53 : vector<2x128xf32>
    %55 = arith.mulf %54, %48 : vector<2x128xf32>
    %c2_i32_21 = arith.constant 2 : i32
    %56 = arith.muli %arg0, %c2_i32_21 : i32
    %57 = tpu.iota {dimensions = array<i32: 0>} : vector<2x128xi32>
    %58 = vector.broadcast %56 : i32 to vector<2x128xi32>
    %59 = arith.addi %58, %57 : vector<2x128xi32>
    %c2_i32_22 = arith.constant 2 : i32
    %60 = vector.broadcast %c2_i32_22 : i32 to vector<2x128xi32>
    %61 = arith.cmpi slt, %59, %60 : vector<2x128xi32>
    %cst_23 = arith.constant 0.000000e+00 : f32
    %62 = vector.broadcast %cst_23 : f32 to vector<2x128xf32>
    %63 = arith.select %61, %55, %62 : vector<2x128xi1>, vector<2x128xf32>
    %64 = vector.shape_cast %63 : vector<2x128xf32> to vector<1x2x128xf32>
    %cst_24 = arith.constant dense<0.000000e+00> : vector<1xf32>
    %65 = vector.multi_reduction <add>, %64, %cst_24 [1, 2] : vector<1x2x128xf32> to vector<1xf32>
    %66 = vector.shape_cast %65 : vector<1xf32> to vector<1x1x1xf32>
    %67 = vector.extract %66[0, 0, 0] : f32 from vector<1x1x1xf32>
    %68 = vector.broadcast %67 : f32 to vector<1x8x128xf32>
    %c0_25 = arith.constant 0 : index
    %c0_26 = arith.constant 0 : index
    %c0_27 = arith.constant 0 : index
    %69 = vector.load %arg5[%c0_25, %c0_26, %c0_27] : memref<1x8x128xf32, #tpu.memory_space<vmem>>, vector<1x8x128xf32>
    tpu.vector_store %arg5[%c0_25, %c0_26, %c0_27], %68 {strides = array<i32>} : memref<1x8x128xf32, #tpu.memory_space<vmem>>, vector<1x8x128xf32>,
    return
  }
  func.func @transform_0(%arg0: i32) -> (i32, i32) {
    %c0_i32 = arith.constant 0 : i32
    %c0_i32_0 = arith.constant 0 : i32
    return %arg0, %c0_i32 : i32, i32
  }
  func.func @transform_1(%arg0: i32) -> (i32, i32) {
    %c0_i32 = arith.constant 0 : i32
    %c0_i32_0 = arith.constant 0 : i32
    return %arg0, %c0_i32 : i32, i32
  }
  func.func @transform_2(%arg0: i32) -> (i32, i32) {
    %c0_i32 = arith.constant 0 : i32
    %c0_i32_0 = arith.constant 0 : i32
    %c0_i32_1 = arith.constant 0 : i32
    return %c0_i32, %c0_i32_0 : i32, i32
  }
  func.func @transform_3(%arg0: i32) -> (i32, i32) {
    %c0_i32 = arith.constant 0 : i32
    %c0_i32_0 = arith.constant 0 : i32
    %c0_i32_1 = arith.constant 0 : i32
    return %c0_i32, %c0_i32_0 : i32, i32
  }
  func.func @transform_4(%arg0: i32) -> (i32, i32, i32) {
    %c0_i32 = arith.constant 0 : i32
    %c0_i32_0 = arith.constant 0 : i32
    %c0_i32_1 = arith.constant 0 : i32
    return %arg0, %c0_i32, %c0_i32_0 : i32, i32, i32
  }
}

</mosaic_0001>

<llo_original>
// kernel: tpu_custom_call.1
$region0: #{tpu_custom_call.1}
  #allocation0 [shape = 'u32[]', space=smem, size = 0x4, offset = 0x4, fixed_abs, tag = 'smem constant byte address 0x4 - core index']
  #allocation1 [shape = 'u32[144,128]{1,0:T(1,128)}', space=vmem, size = 0x12000, scoped, tag = 'internal scratch']
  %s0 = inlined_call_operand.hbm [shape: s32[2,32], index: 0, kind: input, shape index: {}]
  %s1 = inlined_call_operand.vmem [shape: f32[2,128], index: 1, kind: input, shape index: {}]
  %s2 = inlined_call_operand.vmem [shape: f32[1,128], index: 2, kind: input, shape index: {}]
  %s3 = inlined_call_operand.hbm [shape: f32[32,128], index: 3, kind: input, shape index: {}]
  %s4 = inlined_call_operand.hbm [shape: f32[1,8,128], index: 4, kind: output, shape index: {}]
  %s5 = sld [smem:[#allocation0]]
  $region34: #{tpu_custom_call.1} parent=0
    _
  %s7 = ssub.s32 1, %s5
  %s8 = scalar_select 0, %s7, %s5
  $region1: #{tpu_custom_call.1} parent=0
    #allocation2 [shape = 'u8[1024]{0}', space=vmem, size = 0x400, scoped, tag = 'input window, operand 0, single buffered']
    #allocation3 [shape = 's32[1]{0}', space=sflag, size = 0x4, scoped, tag = 'scoped memory for tpu_custom_call.1']
    #allocation4 [shape = 's32[1]{0}', space=sflag, size = 0x4, scoped, tag = 'scoped memory for tpu_custom_call.1']
    #allocation5 [shape = 'u8[16384]{0}', space=vmem, size = 0x4000, scoped, tag = 'input window, operand 3, single buffered']
    #allocation6 [shape = 's32[1]{0}', space=sflag, size = 0x4, scoped, tag = 'scoped memory for tpu_custom_call.1']
    #allocation7 [shape = 'u8[4096]{0}', space=vmem, size = 0x1000, scoped, tag = 'output window, operand 0, single buffered']
    %9 = vsyncpa [#allocation3], 0
    %10 = vsyncpa [#allocation6], 0
    %11 = vsyncpa [#allocation4], 0
    // Predicated region
    $region2: #{tpu_custom_call.1} parent=1 // pred_check
      _
    $region3: #{tpu_custom_call.1} parent=1 // pred_check_branch
      %13 = sbr.rel (0) target = $region5
    $region4: #{tpu_custom_call.1} parent=1 // pred_region
      %s15 = ssub.s32 32, 32
      %16 = vsyncadd [#allocation3], %s15
      %s18 = sshll.u32 [#allocation2], 4
      %s19 = int_to_ptr.vmem [resolvable:$true] %s18
      %21 = dma.hbm_to_vmem [thread:$0]  %s0, 32, %s19, [#allocation3]
    $region5: #{tpu_custom_call.1} parent=1 // pred_fallthru
      _
    // Predicated region
    $region6: #{tpu_custom_call.1} parent=1 // pred_check
      _
    $region7: #{tpu_custom_call.1} parent=1 // pred_check_branch
      %23 = sbr.rel (0) target = $region9
    $region8: #{tpu_custom_call.1} parent=1 // pred_region
      _
    $region9: #{tpu_custom_call.1} parent=1 // pred_fallthru
      _
    // Predicated region
    $region10: #{tpu_custom_call.1} parent=1 // pred_check
      _
    $region11: #{tpu_custom_call.1} parent=1 // pred_check_branch
      %25 = sbr.rel (0) target = $region13
    $region12: #{tpu_custom_call.1} parent=1 // pred_region
      _
    $region13: #{tpu_custom_call.1} parent=1 // pred_fallthru
      _
    // Predicated region
    $region14: #{tpu_custom_call.1} parent=1 // pred_check
      _
    $region15: #{tpu_custom_call.1} parent=1 // pred_check_branch
      %27 = sbr.rel (0) target = $region17
    $region16: #{tpu_custom_call.1} parent=1 // pred_region
      %s29 = ssub.s32 512, 512
      %30 = vsyncadd [#allocation6], %s29
      %s31 = sshll.u32 [#allocation5], 4
      %s32 = int_to_ptr.vmem [resolvable:$true] %s31
      %37 = dma.hbm_to_vmem [thread:$0]  %s3, 512, %s32, [#allocation6], 128, 128, 8
    $region17: #{tpu_custom_call.1} parent=1 // pred_fallthru
      _
    // Predicated region
    $region18: #{tpu_custom_call.1} parent=1 // pred_check
      _
    $region19: #{tpu_custom_call.1} parent=1 // pred_check_branch
      %39 = sbr.rel (0) target = $region21
    $region20: #{tpu_custom_call.1} parent=1 // pred_region
      %40 = dma.done [#allocation3], 32
    $region21: #{tpu_custom_call.1} parent=1 // pred_fallthru
      _
    // Predicated region
    $region22: #{tpu_custom_call.1} parent=1 // pred_check
      _
    $region23: #{tpu_custom_call.1} parent=1 // pred_check_branch
      %42 = sbr.rel (0) target = $region25
    $region24: #{tpu_custom_call.1} parent=1 // pred_region
      %43 = dma.done [#allocation6], 512
    $region25: #{tpu_custom_call.1} parent=1 // pred_fallthru
      _
    %v44 = vld [vmem:[%s1] sm:$0x3]
    %v45 = vlaneseq
    %v46 = vand.u32 %v45, 127
    %47 = vrot.lane.b32.xlu0 %v44, 127
    %v48 = vpop.permute.xlu0 %47
    %49 = vrot.lane.b32.xlu0 %v44, 1
    %v50 = vpop.permute.xlu0 %49
    %v51 = vand.u32 %v46, 1
    %vm52 = vcmp.eq.s32.totalorder %v51, 0
    %v53 = vsel %vm52, %v48, %v50
    %v54 = vmax.f32 %v44, %v53
    %55 = vrot.lane.b32.xlu0 %v54, 126
    %v56 = vpop.permute.xlu0 %55
    %57 = vrot.lane.b32.xlu0 %v54, 2
    %v58 = vpop.permute.xlu0 %57
    %v59 = vand.u32 %v46, 2
    %vm60 = vcmp.eq.s32.totalorder %v59, 0
    %v61 = vsel %vm60, %v56, %v58
    %v62 = vmax.f32 %v54, %v61
    %v63 = vsub.f32 %v44, %v62
    %v64 = vmul.f32 %v63, 1.442695
    %v65 = vpow.pop %v64
    %66 = vrot.lane.b32.xlu0 %v65, 127
    %v67 = vpop.permute.xlu0 %66
    %68 = vrot.lane.b32.xlu0 %v65, 1
    %v69 = vpop.permute.xlu0 %68
    %v70 = vsel %vm52, %v67, %v69
    %v71 = vadd.f32 %v65, %v70
    %72 = vrot.lane.b32.xlu0 %v71, 126
    %v73 = vpop.permute.xlu0 %72
    %74 = vrot.lane.b32.xlu0 %v71, 2
    %v75 = vpop.permute.xlu0 %74
    %v76 = vsel %vm60, %v73, %v75
    %v77 = vadd.f32 %v71, %v76
    %v78 = vlog2.pop %v77
    %v79 = vmul.f32 %v78, 0.6931472
    %v80 = vld [vmem:[#allocation2] sm:$0x3]
    %v81 = vcvt.s32.f32 %v80
    %v82 = vld [vmem:[#allocation5] sm:$0xff]
    %v83 = vld [vmem:[#allocation5 + $0x8] sm:$0xff]
    %v84 = vld [vmem:[#allocation5 + $0x10] sm:$0xff]
    %v85 = vld [vmem:[#allocation5 + $0x18] sm:$0xff]
    %vm86 = vcmask 261120
    %v88 = vsel %vm86, %v81, 0
    %90 = vmatprep.subr.mxu0 0.0
    %91 = vmatpush1.msra.mxu0 %v82
    %92 = vmatprep.subr.mxu0 0.0
    %93 = vmatpush1.msra.mxu0 %v83
    %94 = vmatprep.subr.mxu0 0.0
    %95 = vmatpush1.msra.mxu0 %v84
    %96 = vmatprep.subr.mxu0 0.0
    %97 = vmatpush1.msra.mxu0 %v85
    %98 = vmatprep.subr.mxu0 0.0
    %99 = vmatpush1.msra.mxu0 0.0
    %100 = vmatprep.subr.mxu0 0.0
    %101 = vmatpush1.msra.mxu0 0.0
    %102 = vmatprep.subr.mxu0 0.0
    %103 = vmatpush1.msra.mxu0 0.0
    %104 = vmatprep.subr.mxu0 0.0
    %105 = vmatpush1.msra.mxu0 0.0
    %106 = vmatprep.subr.mxu0 0.0
    %107 = vmatpush1.msra.mxu0 0.0
    %108 = vmatprep.subr.mxu0 0.0
    %109 = vmatpush1.msra.mxu0 0.0
    %110 = vmatprep.subr.mxu0 0.0
    %111 = vmatpush1.msra.mxu0 0.0
    %112 = vmatprep.subr.mxu0 0.0
    %113 = vmatpush1.msra.mxu0 0.0
    %114 = vmatprep.subr.mxu0 0.0
    %115 = vmatpush1.msra.mxu0 0.0
    %116 = vmatprep.subr.mxu0 0.0
    %117 = vmatpush1.msra.mxu0 0.0
    %118 = vmatprep.subr.mxu0 0.0
    %119 = vmatpush1.msra.mxu0 0.0
    %120 = vmatprep.subr.mxu0 0.0
    %121 = vmatpush1.msra.mxu0 0.0
    %122 = vmatprep.subr.mxu0 0.0
    %123 = vmatpush1.msra.mxu0 0.0
    %124 = vmatprep.subr.mxu0 0.0
    %125 = vmatpush1.msra.mxu0 0.0
    %126 = vmatprep.subr.mxu0 0.0
    %127 = vmatpush1.msra.mxu0 0.0
    %128 = vmatprep.subr.mxu0 0.0
    %129 = vmatpush1.msra.mxu0 0.0
    %130 = vmatprep.subr.mxu0 0.0
    %131 = vmatpush1.msra.mxu0 0.0
    %132 = vmatprep.subr.mxu0 0.0
    %133 = vmatpush1.msra.mxu0 0.0
    %134 = vmatprep.subr.mxu0 0.0
    %135 = vmatpush1.msra.mxu0 0.0
    %136 = vmatprep.subr.mxu0 0.0
    %137 = vmatpush1.msra.mxu0 0.0
    %138 = vmatprep.subr.mxu0 0.0
    %139 = vmatpush1.msra.mxu0 0.0
    %140 = vmatprep.subr.mxu0 0.0
    %141 = vmatpush1.msra.mxu0 0.0
    %142 = vmatprep.subr.mxu0 0.0
    %143 = vmatpush1.msra.mxu0 0.0
    %144 = vmatprep.subr.mxu0 0.0
    %145 = vmatpush1.msra.mxu0 0.0
    %146 = vmatprep.subr.mxu0 0.0
    %147 = vmatpush1.msra.mxu0 0.0
    %148 = vmatprep.subr.mxu0 0.0
    %149 = vmatpush1.msra.mxu0 0.0
    %150 = vmatprep.subr.mxu0 0.0
    %151 = vmatpush1.msra.mxu0 0.0
    %152 = vmatprep.subr.mxu0 0.0
    %153 = vmatpush1.msra.mxu0 0.0
    %154 = vmatprep.mubr.f32.mxu0 0.0
    %155 = vmatmul.mubr.f32.gmra.mrb[0].mxu0 %v88
    %v156 = vpop.f32.mrb[0].mxu0
    %v157 = vadd.f32 0.0, %v156
    %v158 = vpop.f32.mrb[0].mxu0
    %159 = vdwg.mxu0
    %v160 = vcvt.s32.f32 %v46
    %vm161 = vcmp.eq.f32.partialorder %v157, %v160
    %v162 = vld [vmem:[%s2] sm:$0x1]
    %v163 = vsub.f32 %v79, %v63
    %v165 = vlaneseq
    %v166 = vshrl.u32 %v165, 7
    %v167 = vsub.s32 0, %v166
    %v168 = vrot.slane %v162, %v167
    %v170 = vmul.f32 %v168, %v163
    %v171 = vsel %vm161, %v170, 0.0
    %v172 = vsub.f32 0.0, %v171
    %v173 = vmul.f32 %v172, 1.442695
    %v174 = vpow.pop %v173
    %v175 = vsub.f32 1.0, %v174
    %v176 = vmul.f32 %v175, %v175
    %v177 = vmul.f32 %v176, %v171
    %s178 = smul.u32 0, 2
    %v179 = vlaneseq
    %v180 = vshrl.u32 %v179, 7
    %v181 = vstv %s178
    %v182 = vadd.s32 %v181, %v180
    %vm183 = vcmp.lt.s32.totalorder %v182, 2
    %v184 = vsel %vm183, %v177, 0.0
    %vm185 = vcmask 1041408
    %v186 = vsel %vm185, %v184, 0.0
    %187 = vadd.xlane.f32.xlu0 %v186
    %v188 = vpop.xlane.xlu0 %187
    %v189 = vrot.slane %v188, 4
    %v190 = vadd.f32 %v188, %v189
    %v191 = vrot.slane %v190, 2
    %v192 = vadd.f32 %v190, %v191
    %v193 = vrot.slane %v192, 1
    %v194 = vadd.f32 %v192, %v193
    %s195 = vtos %v194
    %v196 = vstv %s195
    %197 = vst [vmem:[#allocation7] sm:$0xff] %v196
    // Predicated region
    $region26: #{tpu_custom_call.1} parent=1 // pred_check
      _
    $region27: #{tpu_custom_call.1} parent=1 // pred_check_branch
      %199 = sbr.rel (0) target = $region29
    $region28: #{tpu_custom_call.1} parent=1 // pred_region
      %s201 = ssub.s32 128, 128
      %202 = vsyncadd [#allocation4], %s201
      %s204 = sshll.u32 [#allocation7], 4
      %s205 = int_to_ptr.vmem [resolvable:$true] %s204
      %207 = dma.vmem_to_hbm [thread:$0]  %s205, 128, %s4, [#allocation4]
    $region29: #{tpu_custom_call.1} parent=1 // pred_fallthru
      _
    // Predicated region
    $region30: #{tpu_custom_call.1} parent=1 // pred_check
      _
    $region31: #{tpu_custom_call.1} parent=1 // pred_check_branch
      %209 = sbr.rel (0) target = $region33
    $region32: #{tpu_custom_call.1} parent=1 // pred_region
      %210 = dma.done [#allocation4], 128
    $region33: #{tpu_custom_call.1} parent=1 // pred_fallthru
      _
    %211 = vsyncpa [#allocation3], 1
    %212 = vsyncpa [#allocation6], 1
    %213 = vsyncpa [#allocation4], 1

</llo_original>
